<compile_context>
chip_gen: v5e
topology: v5e:2x2
jax: 0.10.0
libtpu: 0.0.40
codegen_flags: <defaults>
</compile_context>

<pallas_src>
import functools

import jax
import jax.numpy as jnp
from jax.experimental import pallas as pl
from jax.experimental.pallas import tpu as pltpu


def _round_up(v, m):
    return ((v + m - 1) // m) * m


def _pad_cast(a, shape, dtype):
    """Zero-pad `a` into `shape` and cast to `dtype`."""
    out = jnp.zeros(shape, dtype)
    idx = tuple(slice(0, s) for s in a.shape)
    return out.at[idx].set(a.astype(dtype))


def _choose_tm(batch, tm=None):
    """Adaptive batch tile (multiple of 16 for bf16 sublane packing)."""
    rb = _round_up(max(batch, 1), 16)
    if tm is not None:
        return max(16, min(_round_up(tm, 16), rb))
    if rb <= 32:
        return rb                              # tiny batch: one small tile
    if rb <= 1024:
        return _round_up((rb + 1) // 2, 16)    # >=2 tiles -> both TCs on v7x
    return 512                                 # large batch: amortize step cost


def prepare_netbio_params(params, dtype=jnp.bfloat16):
    """Pad/cast the 4 weights and pack the 4 biases ONCE (cache the result).

    params: dict with W1..W4 ([in,out], already transposed for x @ W) and
    b1..b4 ([1,out]).  Returns a dict of padded bf16 weights + packed f32 bias.
    """
    n_inputs, n_hidden = params["W1"].shape
    n_outputs = params["W2"].shape[1]
    NI = _round_up(n_inputs, 128)
    NH = _round_up(n_hidden, 128)
    NO = _round_up(n_outputs, 128)
    BW = max(NI, NH, NO)

    prepared = dict(
        w1=_pad_cast(params["W1"], (NI, NH), dtype),
        w2=_pad_cast(params["W2"], (NH, NO), dtype),
        w3=_pad_cast(params["W3"], (NO, NH), dtype),
        w4=_pad_cast(params["W4"], (NH, NI), dtype),
    )
    b_pack = jnp.zeros((4, BW), jnp.float32)
    b_pack = b_pack.at[0, :n_hidden].set(params["b1"].reshape(-1).astype(jnp.float32))
    b_pack = b_pack.at[1, :n_outputs].set(params["b2"].reshape(-1).astype(jnp.float32))
    b_pack = b_pack.at[2, :n_hidden].set(params["b3"].reshape(-1).astype(jnp.float32))
    b_pack = b_pack.at[3, :n_inputs].set(params["b4"].reshape(-1).astype(jnp.float32))
    prepared["b_pack"] = b_pack
    return prepared


def netbio_forward(x, prepared, *, n_inputs, n_hidden, n_outputs,
                   tm=None, out_dtype=None):
    """x: [B, n_inputs]. prepared: output of prepare_netbio_params().

    Returns (encode [B, n_outputs], decode [B, n_inputs]) in out_dtype (default
    x.dtype).
    """
    B, d = x.shape
    assert d == n_inputs, (d, n_inputs)

    NI = _round_up(n_inputs, 128)
    NH = _round_up(n_hidden, 128)
    NO = _round_up(n_outputs, 128)
    BW = max(NI, NH, NO)
    out_dtype = x.dtype if out_dtype is None else out_dtype

    tm = _choose_tm(B, tm)
    BP = _round_up(B, tm)

    # x: skip the extra pad/cast HBM pass when already aligned; the bf16 cast of
    # the tile happens inside the kernel either way.
    if BP == B and NI == n_inputs:
        xp = x
    else:
        xp = _pad_cast(x, (BP, NI), jnp.bfloat16)

    w1, w2, w3, w4, b_pack = (prepared[k] for k in ("w1", "w2", "w3", "w4", "b_pack"))

    # Resident-weight footprint (bf16, single copy).
    w_bytes_single = 2 * (NI * NH + NH * NO + NO * NH + NH * NI)
    single_buffer_weights = w_bytes_single > (4 << 20)
    # TODO(synk): if 2*w_bytes_single exceeds ~24 MiB (v7x's 64 MiB VMEM), switch
    # W1/W4 to a K-tiled reduction grid axis ("arbitrary") with an f32 accumulator
    # instead of keeping all weights fully resident.

    def kernel(x_ref, w1_ref, w2_ref, w3_ref, w4_ref, b_ref, enc_ref, dec_ref):
        xt = x_ref[...].astype(jnp.bfloat16)    # [tm, NI]
        b = b_ref[...]                          # [4, BW] f32
        b1 = b[0:1, :NH]
        b2 = b[1:2, :NO]
        b3 = b[2:3, :NH]
        b4 = b[3:4, :NI]

        # encoder
        h1 = jnp.dot(xt, w1_ref[...], preferred_element_type=jnp.float32) + b1
        h1 = jnp.maximum(h1, 0.0).astype(jnp.bfloat16)
        enc = jnp.dot(h1, w2_ref[...], preferred_element_type=jnp.float32) + b2
        enc_ref[...] = enc.astype(enc_ref.dtype)

        # decoder (consumes the encoder output, no HBM round-trip)
        h2 = jnp.dot(enc.astype(jnp.bfloat16), w3_ref[...],
                     preferred_element_type=jnp.float32) + b3
        h2 = jnp.maximum(h2, 0.0).astype(jnp.bfloat16)
        dec = jnp.dot(h2, w4_ref[...], preferred_element_type=jnp.float32) + b4
        dec_ref[...] = dec.astype(dec_ref.dtype)

    def resident(shape):
        if single_buffer_weights:
            # Constant index_map => never re-DMA'd; a second buffer is pure waste.
            return pl.BlockSpec(shape, lambda i: (0, 0),
                                pipeline_mode=pl.Buffered(1))
        return pl.BlockSpec(shape, lambda i: (0, 0))

    # Explicit VMEM budget from the actual tile footprint (+50% headroom).
    itemsize_x = jnp.dtype(xp.dtype).itemsize
    itemsize_o = jnp.dtype(out_dtype).itemsize
    buf_w = 1 if single_buffer_weights else 2
    vmem_need = (2 * tm * NI * itemsize_x              # x tile, double-buffered
                 + 2 * tm * (NO + NI) * itemsize_o     # enc/dec tiles, double-buffered
                 + buf_w * w_bytes_single              # resident weights
                 + 2 * 4 * BW * 4)                     # packed biases
    vmem_limit = int(min(max(int(vmem_need * 1.5) + (2 << 20), 32 << 20), 128 << 20))

    flops = 2 * BP * (NI * NH + NH * NO + NO * NH + NH * NI)
    bytes_accessed = (xp.size * itemsize_x
                      + w_bytes_single + 4 * BW * 4
                      + BP * (NO + NI) * itemsize_o)
    cost = pl.CostEstimate(flops=flops, transcendentals=0,
                           bytes_accessed=bytes_accessed)

    enc_pad, dec_pad = pl.pallas_call(
        kernel,
        out_shape=(
            jax.ShapeDtypeStruct((BP, NO), out_dtype),
            jax.ShapeDtypeStruct((BP, NI), out_dtype),
        ),
        grid=(BP // tm,),
        in_specs=[
            pl.BlockSpec((tm, NI), lambda i: (i, 0)),   # x tile moves with batch
            resident((NI, NH)),                         # W1
            resident((NH, NO)),                         # W2
            resident((NO, NH)),                         # W3
            resident((NH, NI)),                         # W4
            pl.BlockSpec((4, BW), lambda i: (0, 0)),    # packed biases
        ],
        out_specs=(
            pl.BlockSpec((tm, NO), lambda i: (i, 0)),   # enc tile
            pl.BlockSpec((tm, NI), lambda i: (i, 0)),   # dec tile
        ),
        compiler_params=pltpu.CompilerParams(
            dimension_semantics=("parallel",),          # megacore on v7x
            vmem_limit_bytes=vmem_limit,
        ),
        cost_estimate=cost,
    )(xp, w1, w2, w3, w4, b_pack)

    # Strip batch and lane padding.
    return enc_pad[:B, :n_outputs], dec_pad[:B, :n_inputs]


def netbio_apply(x, params, *, tm=None, out_dtype=None):
    """Convenience drop-in (re-pads weights every call; prefer caching
    prepare_netbio_params() + netbio_forward() for repeated use)."""
    n_inputs, n_hidden = params["W1"].shape
    n_outputs = params["W2"].shape[1]
    prepared = prepare_netbio_params(params)
    return netbio_forward(x, prepared, n_inputs=n_inputs, n_hidden=n_hidden,
                          n_outputs=n_outputs, tm=tm, out_dtype=out_dtype)


def init_params(key, n_inputs, n_hidden, n_outputs, dtype=jnp.float32):
    """Deterministic PyTorch-style uniform(-1/sqrt(fan_in), 1/sqrt(fan_in)) init.
    Weights stored as [in, out] (already transposed for x @ W)."""
    def linear(k, fan_in, fan_out):
        kw, kb = jax.random.split(k)
        bound = 1.0 / jnp.sqrt(fan_in)
        W = jax.random.uniform(kw, (fan_in, fan_out), dtype, -bound, bound)
        b = jax.random.uniform(kb, (1, fan_out), dtype, -bound, bound)
        return W, b

    k1, k2, k3, k4 = jax.random.split(key, 4)
    W1, b1 = linear(k1, n_inputs, n_hidden)    # encoder[0]
    W2, b2 = linear(k2, n_hidden, n_outputs)   # encoder[2]
    W3, b3 = linear(k3, n_outputs, n_hidden)   # decoder[0]
    W4, b4 = linear(k4, n_hidden, n_inputs)    # decoder[2]
    return dict(W1=W1, b1=b1, W2=W2, b2=b2, W3=W3, b3=b3, W4=W4, b4=b4)


def netbio_ref_f32(x, p):
    """Pure-f32 reference (matches the PyTorch module numerically)."""
    h1 = jnp.maximum(x @ p["W1"] + p["b1"], 0.0)
    enc = h1 @ p["W2"] + p["b2"]
    h2 = jnp.maximum(enc @ p["W3"] + p["b3"], 0.0)
    dec = h2 @ p["W4"] + p["b4"]
    return enc, dec


def netbio_ref_bf16(x, p):
    """Reference using the same bf16-input / f32-accumulate recipe as the kernel."""
    bf16 = jnp.bfloat16
    xb = x.astype(bf16)
    h1 = jnp.dot(xb, p["W1"].astype(bf16), preferred_element_type=jnp.float32) + p["b1"]
    h1 = jnp.maximum(h1, 0.0).astype(bf16)
    enc = jnp.dot(h1, p["W2"].astype(bf16), preferred_element_type=jnp.float32) + p["b2"]
    h2 = jnp.dot(enc.astype(bf16), p["W3"].astype(bf16),
                 preferred_element_type=jnp.float32) + p["b3"]
    h2 = jnp.maximum(h2, 0.0).astype(bf16)
    dec = jnp.dot(h2, p["W4"].astype(bf16), preferred_element_type=jnp.float32) + p["b4"]
    return enc, dec


if __name__ == "__main__":
    key = jax.random.PRNGKey(0)
    kx, kp, kx2 = jax.random.split(key, 3)

    # Small shapes consistent with the module (n_outputs defaults to 2).
    batch, n_inputs, n_hidden, n_outputs = 8, 32, 64, 2

    x = jax.random.normal(kx, (batch, n_inputs), dtype=jnp.float32)
    params = init_params(kp, n_inputs, n_hidden, n_outputs)

    # Pad/cast weights ONCE; only activations change between forward calls.
    prepared = prepare_netbio_params(params)
    jax.block_until_ready(prepared)

    fwd = jax.jit(functools.partial(
        netbio_forward, n_inputs=n_inputs, n_hidden=n_hidden, n_outputs=n_outputs))

    # --- tiny-batch path (adaptive tm -> single 16-row tile) ------------------
    enc, dec = fwd(x, prepared)
    jax.block_until_ready((enc, dec))
    assert enc.shape == (batch, n_outputs) and dec.shape == (batch, n_inputs)

    # Tight check vs a bf16-matched JAX reference (same precision recipe).
    enc_rb, dec_rb = netbio_ref_bf16(x, params)
    assert jnp.allclose(enc, enc_rb, atol=1e-2, rtol=1e-2)
    assert jnp.allclose(dec, dec_rb, atol=1e-2, rtol=1e-2)

    # Loose sanity check vs the full-f32 PyTorch-equivalent reference.
    enc_rf, dec_rf = netbio_ref_f32(x, params)
    assert jnp.allclose(enc, enc_rf, atol=5e-2, rtol=5e-2)
    assert jnp.allclose(dec, dec_rf, atol=5e-2, rtol=5e-2)

    # --- mid-batch path (2-step grid -> megacore "parallel" actually engaged) --
    batch2 = 200
    x2 = jax.random.normal(kx2, (batch2, n_inputs), dtype=jnp.float32)
    enc2, dec2 = fwd(x2, prepared)
    jax.block_until_ready((enc2, dec2))
    assert enc2.shape == (batch2, n_outputs) and dec2.shape == (batch2, n_inputs)
    enc2_rb, dec2_rb = netbio_ref_bf16(x2, params)
    assert jnp.allclose(enc2, enc2_rb, atol=1e-2, rtol=1e-2)
    assert jnp.allclose(dec2, dec2_rb, atol=1e-2, rtol=1e-2)

    print("KERNEL_OK")
</pallas_src>

<mosaic_0001>
module attributes {stable_mosaic.version = 11 : i64} {
  func.func @kernel(%arg0: i32, %arg1: memref<16x128xbf16, #tpu.memory_space<vmem>>, %arg2: memref<128x128xbf16, #tpu.memory_space<vmem>>, %arg3: memref<128x128xbf16, #tpu.memory_space<vmem>>, %arg4: memref<128x128xbf16, #tpu.memory_space<vmem>>, %arg5: memref<128x128xbf16, #tpu.memory_space<vmem>>, %arg6: memref<4x128xf32, #tpu.memory_space<vmem>>, %arg7: memref<16x128xf32, #tpu.memory_space<vmem>>, %arg8: memref<16x128xf32, #tpu.memory_space<vmem>>) attributes {dimension_semantics = [#tpu.dimension_semantics<parallel>], iteration_bounds = array<i64: 1>, scalar_prefetch = 0 : i64, scratch_operands = 0 : i64, tpu.core_type = #tpu.core_type<tc>, window_params = [{transform_indices = @transform_0, window_bounds = array<i64: 16, 128>}, {pipeline_mode = #tpu.pipeline_mode<synchronous>, transform_indices = @transform_1, window_bounds = array<i64: 128, 128>}, {pipeline_mode = #tpu.pipeline_mode<synchronous>, transform_indices = @transform_2, window_bounds = array<i64: 128, 128>}, {pipeline_mode = #tpu.pipeline_mode<synchronous>, transform_indices = @transform_3, window_bounds = array<i64: 128, 128>}, {pipeline_mode = #tpu.pipeline_mode<synchronous>, transform_indices = @transform_4, window_bounds = array<i64: 128, 128>}, {pipeline_mode = #tpu.pipeline_mode<synchronous>, transform_indices = @transform_5, window_bounds = array<i64: 4, 128>}, {transform_indices = @transform_6, window_bounds = array<i64: 16, 128>}, {transform_indices = @transform_7, window_bounds = array<i64: 16, 128>}]} {
    %c0 = arith.constant 0 : index
    %c0_0 = arith.constant 0 : index
    %0 = vector.load %arg1[%c0, %c0_0] : memref<16x128xbf16, #tpu.memory_space<vmem>>, vector<16x128xbf16>
    %c0_1 = arith.constant 0 : index
    %c0_2 = arith.constant 0 : index
    %1 = vector.load %arg6[%c0_1, %c0_2] : memref<4x128xf32, #tpu.memory_space<vmem>>, vector<4x128xf32>
    %2 = vector.extract_strided_slice %1 {offsets = [0, 0], sizes = [1, 128], strides = [1, 1]} : vector<4x128xf32> to vector<1x128xf32>
    %3 = vector.extract_strided_slice %1 {offsets = [1, 0], sizes = [1, 128], strides = [1, 1]} : vector<4x128xf32> to vector<1x128xf32>
    %4 = vector.extract_strided_slice %1 {offsets = [2, 0], sizes = [1, 128], strides = [1, 1]} : vector<4x128xf32> to vector<1x128xf32>
    %5 = vector.extract_strided_slice %1 {offsets = [3, 0], sizes = [1, 128], strides = [1, 1]} : vector<4x128xf32> to vector<1x128xf32>
    %c0_3 = arith.constant 0 : index
    %c0_4 = arith.constant 0 : index
    %6 = vector.load %arg2[%c0_3, %c0_4] : memref<128x128xbf16, #tpu.memory_space<vmem>>, vector<128x128xbf16>
    %cst = arith.constant dense<0.000000e+00> : vector<16x128xf32>
    %7 = tpu.matmul %0, %6, %cst {dimension_numbers = #tpu.dot_dimension_numbers<[1], [0], [0], [1], [0, 0, 1, 1], [], []>} : vector<16x128xbf16>, vector<128x128xbf16>, vector<16x128xf32> -> vector<16x128xf32>
    %8 = vector.broadcast %2 : vector<1x128xf32> to vector<16x128xf32>
    %9 = arith.addf %7, %8 : vector<16x128xf32>
    %cst_5 = arith.constant 0.000000e+00 : f32
    %10 = vector.broadcast %cst_5 : f32 to vector<16x128xf32>
    %11 = arith.maximumf %9, %10 : vector<16x128xf32>
    %12 = arith.truncf %11 : vector<16x128xf32> to vector<16x128xbf16>
    %c0_6 = arith.constant 0 : index
    %c0_7 = arith.constant 0 : index
    %13 = vector.load %arg3[%c0_6, %c0_7] : memref<128x128xbf16, #tpu.memory_space<vmem>>, vector<128x128xbf16>
    %cst_8 = arith.constant dense<0.000000e+00> : vector<16x128xf32>
    %14 = tpu.matmul %12, %13, %cst_8 {dimension_numbers = #tpu.dot_dimension_numbers<[1], [0], [0], [1], [0, 0, 1, 1], [], []>} : vector<16x128xbf16>, vector<128x128xbf16>, vector<16x128xf32> -> vector<16x128xf32>
    %15 = vector.broadcast %3 : vector<1x128xf32> to vector<16x128xf32>
    %16 = arith.addf %14, %15 : vector<16x128xf32>
    %c0_9 = arith.constant 0 : index
    %c0_10 = arith.constant 0 : index
    %17 = vector.load %arg7[%c0_9, %c0_10] : memref<16x128xf32, #tpu.memory_space<vmem>>, vector<16x128xf32>
    tpu.vector_store %arg7[%c0_9, %c0_10], %16 {strides = array<i32>} : memref<16x128xf32, #tpu.memory_space<vmem>>, vector<16x128xf32>,
    %18 = arith.truncf %16 : vector<16x128xf32> to vector<16x128xbf16>
    %c0_11 = arith.constant 0 : index
    %c0_12 = arith.constant 0 : index
    %19 = vector.load %arg4[%c0_11, %c0_12] : memref<128x128xbf16, #tpu.memory_space<vmem>>, vector<128x128xbf16>
    %cst_13 = arith.constant dense<0.000000e+00> : vector<16x128xf32>
    %20 = tpu.matmul %18, %19, %cst_13 {dimension_numbers = #tpu.dot_dimension_numbers<[1], [0], [0], [1], [0, 0, 1, 1], [], []>} : vector<16x128xbf16>, vector<128x128xbf16>, vector<16x128xf32> -> vector<16x128xf32>
    %21 = vector.broadcast %4 : vector<1x128xf32> to vector<16x128xf32>
    %22 = arith.addf %20, %21 : vector<16x128xf32>
    %cst_14 = arith.constant 0.000000e+00 : f32
    %23 = vector.broadcast %cst_14 : f32 to vector<16x128xf32>
    %24 = arith.maximumf %22, %23 : vector<16x128xf32>
    %25 = arith.truncf %24 : vector<16x128xf32> to vector<16x128xbf16>
    %c0_15 = arith.constant 0 : index
    %c0_16 = arith.constant 0 : index
    %26 = vector.load %arg5[%c0_15, %c0_16] : memref<128x128xbf16, #tpu.memory_space<vmem>>, vector<128x128xbf16>
    %cst_17 = arith.constant dense<0.000000e+00> : vector<16x128xf32>
    %27 = tpu.matmul %25, %26, %cst_17 {dimension_numbers = #tpu.dot_dimension_numbers<[1], [0], [0], [1], [0, 0, 1, 1], [], []>} : vector<16x128xbf16>, vector<128x128xbf16>, vector<16x128xf32> -> vector<16x128xf32>
    %28 = vector.broadcast %5 : vector<1x128xf32> to vector<16x128xf32>
    %29 = arith.addf %27, %28 : vector<16x128xf32>
    %c0_18 = arith.constant 0 : index
    %c0_19 = arith.constant 0 : index
    %30 = vector.load %arg8[%c0_18, %c0_19] : memref<16x128xf32, #tpu.memory_space<vmem>>, vector<16x128xf32>
    tpu.vector_store %arg8[%c0_18, %c0_19], %29 {strides = array<i32>} : memref<16x128xf32, #tpu.memory_space<vmem>>, vector<16x128xf32>,
    return
  }
  func.func @transform_0(%arg0: i32) -> (i32, i32) {
    %c0_i32 = arith.constant 0 : i32
    %c0_i32_0 = arith.constant 0 : i32
    return %arg0, %c0_i32 : i32, i32
  }
  func.func @transform_1(%arg0: i32) -> (i32, i32) {
    %c0_i32 = arith.constant 0 : i32
    %c0_i32_0 = arith.constant 0 : i32
    %c0_i32_1 = arith.constant 0 : i32
    return %c0_i32, %c0_i32_0 : i32, i32
  }
  func.func @transform_2(%arg0: i32) -> (i32, i32) {
    %c0_i32 = arith.constant 0 : i32
    %c0_i32_0 = arith.constant 0 : i32
    %c0_i32_1 = arith.constant 0 : i32
    return %c0_i32, %c0_i32_0 : i32, i32
  }
  func.func @transform_3(%arg0: i32) -> (i32, i32) {
    %c0_i32 = arith.constant 0 : i32
    %c0_i32_0 = arith.constant 0 : i32
    %c0_i32_1 = arith.constant 0 : i32
    return %c0_i32, %c0_i32_0 : i32, i32
  }
  func.func @transform_4(%arg0: i32) -> (i32, i32) {
    %c0_i32 = arith.constant 0 : i32
    %c0_i32_0 = arith.constant 0 : i32
    %c0_i32_1 = arith.constant 0 : i32
    return %c0_i32, %c0_i32_0 : i32, i32
  }
  func.func @transform_5(%arg0: i32) -> (i32, i32) {
    %c0_i32 = arith.constant 0 : i32
    %c0_i32_0 = arith.constant 0 : i32
    %c0_i32_1 = arith.constant 0 : i32
    return %c0_i32, %c0_i32_0 : i32, i32
  }
  func.func @transform_6(%arg0: i32) -> (i32, i32) {
    %c0_i32 = arith.constant 0 : i32
    %c0_i32_0 = arith.constant 0 : i32
    return %arg0, %c0_i32 : i32, i32
  }
  func.func @transform_7(%arg0: i32) -> (i32, i32) {
    %c0_i32 = arith.constant 0 : i32
    %c0_i32_0 = arith.constant 0 : i32
    return %arg0, %c0_i32 : i32, i32
  }
}

</mosaic_0001>

<llo_original>
// kernel: netbio_forward.1
$region0: #{netbio_forward.1}
  #allocation0 [shape = 'u32[]', space=smem, size = 0x4, offset = 0x4, fixed_abs, tag = 'smem constant byte address 0x4 - core index']
  #allocation1 [shape = 'u32[72,128]{1,0:T(1,128)}', space=vmem, size = 0x9000, scoped, tag = 'internal scratch']
  %s0 = inlined_call_operand.vmem [shape: bf16[16,128], index: 0, kind: input, shape index: {}]
  %s1 = inlined_call_operand.hbm [shape: bf16[128,128], index: 1, kind: input, shape index: {}]
  %s2 = inlined_call_operand.hbm [shape: bf16[128,128], index: 2, kind: input, shape index: {}]
  %s3 = inlined_call_operand.hbm [shape: bf16[128,128], index: 3, kind: input, shape index: {}]
  %s4 = inlined_call_operand.hbm [shape: bf16[128,128], index: 4, kind: input, shape index: {}]
  %s5 = inlined_call_operand.vmem [shape: f32[4,128], index: 5, kind: input, shape index: {}]
  %s6 = inlined_call_operand.vmem [shape: f32[16,128], index: 6, kind: output, shape index: {0}]
  %s7 = inlined_call_operand.vmem [shape: f32[16,128], index: 7, kind: output, shape index: {1}]
  %8 = xla_tuple %s6, %s7
  %s9 = sld [smem:[#allocation0]]
  $region58: #{netbio_forward.1} parent=0
    _
  %s11 = ssub.s32 1, %s9
  %s12 = scalar_select 0, %s11, %s9
  $region1: #{netbio_forward.1} parent=0
    #allocation2 [shape = 'u8[32768]{0}', space=vmem, size = 0x8000, scoped, tag = 'input window, operand 1, single buffered']
    #allocation3 [shape = 's32[1]{0}', space=sflag, size = 0x4, scoped, tag = 'scoped memory for netbio_forward.1']
    #allocation4 [shape = 'u8[32768]{0}', space=vmem, size = 0x8000, scoped, tag = 'input window, operand 2, single buffered']
    #allocation5 [shape = 's32[1]{0}', space=sflag, size = 0x4, scoped, tag = 'scoped memory for netbio_forward.1']
    #allocation6 [shape = 'u8[32768]{0}', space=vmem, size = 0x8000, scoped, tag = 'input window, operand 3, single buffered']
    #allocation7 [shape = 'u8[32768]{0}', space=vmem, size = 0x8000, scoped, tag = 'input window, operand 4, single buffered']
    #allocation8 [shape = 's32[1]{0}', space=sflag, size = 0x4, scoped, tag = 'scoped memory for netbio_forward.1']
    %13 = vsyncpa [#allocation3], 0
    %14 = vsyncpa [#allocation5], 0
    %15 = vsyncpa [#allocation8], 0
    // Predicated region
    $region2: #{netbio_forward.1} parent=1 // pred_check
      _
    $region3: #{netbio_forward.1} parent=1 // pred_check_branch
      %17 = sbr.rel (0) target = $region5
    $region4: #{netbio_forward.1} parent=1 // pred_region
      _
    $region5: #{netbio_forward.1} parent=1 // pred_fallthru
      _
    // Predicated region
    $region6: #{netbio_forward.1} parent=1 // pred_check
      _
    $region7: #{netbio_forward.1} parent=1 // pred_check_branch
      %19 = sbr.rel (0) target = $region9
    $region8: #{netbio_forward.1} parent=1 // pred_region
      %21 = vsyncadd [#allocation3], 0
      %s22 = sshll.u32 %s1, 4
      %s23 = int_to_ptr.hbm [resolvable:$true] %s22
      %s24 = sshll.u32 [#allocation2], 4
      %s25 = int_to_ptr.vmem [resolvable:$true] %s24
      %30 = dma.hbm_to_vmem [thread:$0]  %s23, 1024, %s25, [#allocation3], 64, 64, 4
    $region9: #{netbio_forward.1} parent=1 // pred_fallthru
      _
    // Predicated region
    $region10: #{netbio_forward.1} parent=1 // pred_check
      _
    $region11: #{netbio_forward.1} parent=1 // pred_check_branch
      %32 = sbr.rel (0) target = $region13
    $region12: #{netbio_forward.1} parent=1 // pred_region
      %34 = vsyncadd [#allocation5], 0
      %s35 = sshll.u32 %s2, 4
      %s36 = int_to_ptr.hbm [resolvable:$true] %s35
      %s37 = sshll.u32 [#allocation4], 4
      %s38 = int_to_ptr.vmem [resolvable:$true] %s37
      %43 = dma.hbm_to_vmem [thread:$0]  %s36, 1024, %s38, [#allocation5], 64, 64, 4
    $region13: #{netbio_forward.1} parent=1 // pred_fallthru
      _
    // Predicated region
    $region14: #{netbio_forward.1} parent=1 // pred_check
      _
    $region15: #{netbio_forward.1} parent=1 // pred_check_branch
      %45 = sbr.rel (0) target = $region17
    $region16: #{netbio_forward.1} parent=1 // pred_region
      %47 = vsyncadd [#allocation5], 0
      %s48 = sshll.u32 %s3, 4
      %s49 = int_to_ptr.hbm [resolvable:$true] %s48
      %s50 = sshll.u32 [#allocation6], 4
      %s51 = int_to_ptr.vmem [resolvable:$true] %s50
      %56 = dma.hbm_to_vmem [thread:$0]  %s49, 1024, %s51, [#allocation5], 64, 64, 4
    $region17: #{netbio_forward.1} parent=1 // pred_fallthru
      _
    // Predicated region
    $region18: #{netbio_forward.1} parent=1 // pred_check
      _
    $region19: #{netbio_forward.1} parent=1 // pred_check_branch
      %58 = sbr.rel (0) target = $region21
    $region20: #{netbio_forward.1} parent=1 // pred_region
      %60 = vsyncadd [#allocation8], 0
      %s61 = sshll.u32 %s4, 4
      %s62 = int_to_ptr.hbm [resolvable:$true] %s61
      %s63 = sshll.u32 [#allocation7], 4
      %s64 = int_to_ptr.vmem [resolvable:$true] %s63
      %69 = dma.hbm_to_vmem [thread:$0]  %s62, 1024, %s64, [#allocation8], 64, 64, 4
    $region21: #{netbio_forward.1} parent=1 // pred_fallthru
      _
    // Predicated region
    $region22: #{netbio_forward.1} parent=1 // pred_check
      _
    $region23: #{netbio_forward.1} parent=1 // pred_check_branch
      %71 = sbr.rel (0) target = $region25
    $region24: #{netbio_forward.1} parent=1 // pred_region
      _
    $region25: #{netbio_forward.1} parent=1 // pred_fallthru
      _
    // Predicated region
    $region26: #{netbio_forward.1} parent=1 // pred_check
      _
    $region27: #{netbio_forward.1} parent=1 // pred_check_branch
      %73 = sbr.rel (0) target = $region29
    $region28: #{netbio_forward.1} parent=1 // pred_region
      %75 = dma.done [#allocation3], 1024
    $region29: #{netbio_forward.1} parent=1 // pred_fallthru
      _
    // Predicated region
    $region30: #{netbio_forward.1} parent=1 // pred_check
      _
    $region31: #{netbio_forward.1} parent=1 // pred_check_branch
      %77 = sbr.rel (0) target = $region33
    $region32: #{netbio_forward.1} parent=1 // pred_region
      %79 = dma.done [#allocation5], 1024
    $region33: #{netbio_forward.1} parent=1 // pred_fallthru
      _
    // Predicated region
    $region34: #{netbio_forward.1} parent=1 // pred_check
      _
    $region35: #{netbio_forward.1} parent=1 // pred_check_branch
      %81 = sbr.rel (0) target = $region37
    $region36: #{netbio_forward.1} parent=1 // pred_region
      %83 = dma.done [#allocation5], 1024
    $region37: #{netbio_forward.1} parent=1 // pred_fallthru
      _
    // Predicated region
    $region38: #{netbio_forward.1} parent=1 // pred_check
      _
    $region39: #{netbio_forward.1} parent=1 // pred_check_branch
      %85 = sbr.rel (0) target = $region41
    $region40: #{netbio_forward.1} parent=1 // pred_region
      %87 = dma.done [#allocation8], 1024
    $region41: #{netbio_forward.1} parent=1 // pred_fallthru
      _
    %v88 = vld [vmem:[%s0] sm:$0xf]
    %v89 = vld [vmem:[%s0 + $0x4] sm:$0xf]
    %v90 = vld [vmem:[%s5] sm:$0xf]
    %v91 = vld [vmem:[#allocation2] sm:$0xf]
    %v92 = vld [vmem:[#allocation2 + $0x4] sm:$0xf]
    %v93 = vld [vmem:[#allocation2 + $0x8] sm:$0xf]
    %v94 = vld [vmem:[#allocation2 + $0xc] sm:$0xf]
    %v95 = vld [vmem:[#allocation2 + $0x10] sm:$0xf]
    %v96 = vld [vmem:[#allocation2 + $0x14] sm:$0xf]
    %v97 = vld [vmem:[#allocation2 + $0x18] sm:$0xf]
    %v98 = vld [vmem:[#allocation2 + $0x1c] sm:$0xf]
    %v99 = vld [vmem:[#allocation2 + $0x20] sm:$0xf]
    %v100 = vld [vmem:[#allocation2 + $0x24] sm:$0xf]
    %v101 = vld [vmem:[#allocation2 + $0x28] sm:$0xf]
    %v102 = vld [vmem:[#allocation2 + $0x2c] sm:$0xf]
    %v103 = vld [vmem:[#allocation2 + $0x30] sm:$0xf]
    %v104 = vld [vmem:[#allocation2 + $0x34] sm:$0xf]
    %v105 = vld [vmem:[#allocation2 + $0x38] sm:$0xf]
    %v106 = vld [vmem:[#allocation2 + $0x3c] sm:$0xf]
    %v107 = vperm.slane %v90, 0
    %v110 = vunpack.c.l.b16 %v88
    %v111 = vunpack.c.l.b16 %v89
    %v112 = vpack.c.b16 %v111, %v110
    %v130 = vunpack.c.l.b16 %v91
    %v131 = vunpack.c.l.b16 %v92
    %v132 = vunpack.c.l.b16 %v93
    %v133 = vunpack.c.l.b16 %v94
    %v134 = vunpack.c.l.b16 %v95
    %v135 = vunpack.c.l.b16 %v96
    %v136 = vunpack.c.l.b16 %v97
    %v137 = vunpack.c.l.b16 %v98
    %v138 = vunpack.c.l.b16 %v99
    %v139 = vunpack.c.l.b16 %v100
    %v140 = vunpack.c.l.b16 %v101
    %v141 = vunpack.c.l.b16 %v102
    %v142 = vunpack.c.l.b16 %v103
    %v143 = vunpack.c.l.b16 %v104
    %v144 = vunpack.c.l.b16 %v105
    %v145 = vunpack.c.l.b16 %v106
    %v146 = vpack.c.b16 %v131, %v130
    %v147 = vpack.c.b16 %v133, %v132
    %v148 = vpack.c.b16 %v135, %v134
    %v149 = vpack.c.b16 %v137, %v136
    %v150 = vpack.c.b16 %v139, %v138
    %v151 = vpack.c.b16 %v141, %v140
    %v152 = vpack.c.b16 %v143, %v142
    %v153 = vpack.c.b16 %v145, %v144
    %162 = vmatpush.bf16.msra.mxu0 %v153
    %163 = vmatpush.bf16.msra.mxu0 %v152
    %164 = vmatpush.bf16.msra.mxu0 %v151
    %165 = vmatpush.bf16.msra.mxu0 %v150
    %166 = vmatpush.bf16.msra.mxu0 %v149
    %167 = vmatpush.bf16.msra.mxu0 %v148
    %168 = vmatpush.bf16.msra.mxu0 %v147
    %169 = vmatpush.bf16.msra.mxu0 %v146
    %170 = vmatmul.bf16.gmra.mxu0 %v112
    %v171 = vpop.f32.mrf.mxu0
    %v172 = vadd.f32 %v107, %v171
    %v173 = vpop.f32.mrf.mxu0
    %v174 = vadd.f32 %v107, %v173
    %175 = vdwg.mxu0
    %v176 = vmax.f32 %v172, 0.0
    %v177 = vmax.f32 %v174, 0.0
    %v178 = vpack.c.bf16 %v177, %v176
    %v179 = vld [vmem:[#allocation4] sm:$0xf]
    %v180 = vld [vmem:[#allocation4 + $0x4] sm:$0xf]
    %v181 = vld [vmem:[#allocation4 + $0x8] sm:$0xf]
    %v182 = vld [vmem:[#allocation4 + $0xc] sm:$0xf]
    %v183 = vld [vmem:[#allocation4 + $0x10] sm:$0xf]
    %v184 = vld [vmem:[#allocation4 + $0x14] sm:$0xf]
    %v185 = vld [vmem:[#allocation4 + $0x18] sm:$0xf]
    %v186 = vld [vmem:[#allocation4 + $0x1c] sm:$0xf]
    %v187 = vld [vmem:[#allocation4 + $0x20] sm:$0xf]
    %v188 = vld [vmem:[#allocation4 + $0x24] sm:$0xf]
    %v189 = vld [vmem:[#allocation4 + $0x28] sm:$0xf]
    %v190 = vld [vmem:[#allocation4 + $0x2c] sm:$0xf]
    %v191 = vld [vmem:[#allocation4 + $0x30] sm:$0xf]
    %v192 = vld [vmem:[#allocation4 + $0x34] sm:$0xf]
    %v193 = vld [vmem:[#allocation4 + $0x38] sm:$0xf]
    %v194 = vld [vmem:[#allocation4 + $0x3c] sm:$0xf]
    %v195 = vperm.slane %v90, 1
    %v212 = vunpack.c.l.b16 %v179
    %v213 = vunpack.c.l.b16 %v180
    %v214 = vunpack.c.l.b16 %v181
    %v215 = vunpack.c.l.b16 %v182
    %v216 = vunpack.c.l.b16 %v183
    %v217 = vunpack.c.l.b16 %v184
    %v218 = vunpack.c.l.b16 %v185
    %v219 = vunpack.c.l.b16 %v186
    %v220 = vunpack.c.l.b16 %v187
    %v221 = vunpack.c.l.b16 %v188
    %v222 = vunpack.c.l.b16 %v189
    %v223 = vunpack.c.l.b16 %v190
    %v224 = vunpack.c.l.b16 %v191
    %v225 = vunpack.c.l.b16 %v192
    %v226 = vunpack.c.l.b16 %v193
    %v227 = vunpack.c.l.b16 %v194
    %v228 = vpack.c.b16 %v213, %v212
    %v229 = vpack.c.b16 %v215, %v214
    %v230 = vpack.c.b16 %v217, %v216
    %v231 = vpack.c.b16 %v219, %v218
    %v232 = vpack.c.b16 %v221, %v220
    %v233 = vpack.c.b16 %v223, %v222
    %v234 = vpack.c.b16 %v225, %v224
    %v235 = vpack.c.b16 %v227, %v226
    %244 = vmatpush.bf16.msra.mxu0 %v235
    %245 = vmatpush.bf16.msra.mxu0 %v234
    %246 = vmatpush.bf16.msra.mxu0 %v233
    %247 = vmatpush.bf16.msra.mxu0 %v232
    %248 = vmatpush.bf16.msra.mxu0 %v231
    %249 = vmatpush.bf16.msra.mxu0 %v230
    %250 = vmatpush.bf16.msra.mxu0 %v229
    %251 = vmatpush.bf16.msra.mxu0 %v228
    %252 = vmatmul.bf16.gmra.mxu0 %v178
    %v253 = vpop.f32.mrf.mxu0
    %v254 = vadd.f32 %v195, %v253
    %v255 = vpop.f32.mrf.mxu0
    %v256 = vadd.f32 %v195, %v255
    %257 = vdwg.mxu0
    %258 = vst [vmem:[%s6] sm:$0xff] %v254
    %259 = vst [vmem:[%s6 + $0x8] sm:$0xff] %v256
    %v260 = vpack.c.bf16 %v256, %v254
    %v261 = vld [vmem:[#allocation6] sm:$0xf]
    %v262 = vld [vmem:[#allocation6 + $0x4] sm:$0xf]
    %v263 = vld [vmem:[#allocation6 + $0x8] sm:$0xf]
    %v264 = vld [vmem:[#allocation6 + $0xc] sm:$0xf]
    %v265 = vld [vmem:[#allocation6 + $0x10] sm:$0xf]
    %v266 = vld [vmem:[#allocation6 + $0x14] sm:$0xf]
    %v267 = vld [vmem:[#allocation6 + $0x18] sm:$0xf]
    %v268 = vld [vmem:[#allocation6 + $0x1c] sm:$0xf]
    %v269 = vld [vmem:[#allocation6 + $0x20] sm:$0xf]
    %v270 = vld [vmem:[#allocation6 + $0x24] sm:$0xf]
    %v271 = vld [vmem:[#allocation6 + $0x28] sm:$0xf]
    %v272 = vld [vmem:[#allocation6 + $0x2c] sm:$0xf]
    %v273 = vld [vmem:[#allocation6 + $0x30] sm:$0xf]
    %v274 = vld [vmem:[#allocation6 + $0x34] sm:$0xf]
    %v275 = vld [vmem:[#allocation6 + $0x38] sm:$0xf]
    %v276 = vld [vmem:[#allocation6 + $0x3c] sm:$0xf]
    %v277 = vperm.slane %v90, 2
    %v294 = vunpack.c.l.b16 %v261
    %v295 = vunpack.c.l.b16 %v262
    %v296 = vunpack.c.l.b16 %v263
    %v297 = vunpack.c.l.b16 %v264
    %v298 = vunpack.c.l.b16 %v265
    %v299 = vunpack.c.l.b16 %v266
    %v300 = vunpack.c.l.b16 %v267
    %v301 = vunpack.c.l.b16 %v268
    %v302 = vunpack.c.l.b16 %v269
    %v303 = vunpack.c.l.b16 %v270
    %v304 = vunpack.c.l.b16 %v271
    %v305 = vunpack.c.l.b16 %v272
    %v306 = vunpack.c.l.b16 %v273
    %v307 = vunpack.c.l.b16 %v274
    %v308 = vunpack.c.l.b16 %v275
    %v309 = vunpack.c.l.b16 %v276
    %v310 = vpack.c.b16 %v295, %v294
    %v311 = vpack.c.b16 %v297, %v296
    %v312 = vpack.c.b16 %v299, %v298
    %v313 = vpack.c.b16 %v301, %v300
    %v314 = vpack.c.b16 %v303, %v302
    %v315 = vpack.c.b16 %v305, %v304
    %v316 = vpack.c.b16 %v307, %v306
    %v317 = vpack.c.b16 %v309, %v308
    %326 = vmatpush.bf16.msra.mxu0 %v317
    %327 = vmatpush.bf16.msra.mxu0 %v316
    %328 = vmatpush.bf16.msra.mxu0 %v315
    %329 = vmatpush.bf16.msra.mxu0 %v314
    %330 = vmatpush.bf16.msra.mxu0 %v313
    %331 = vmatpush.bf16.msra.mxu0 %v312
    %332 = vmatpush.bf16.msra.mxu0 %v311
    %333 = vmatpush.bf16.msra.mxu0 %v310
    %334 = vmatmul.bf16.gmra.mxu0 %v260
    %v335 = vpop.f32.mrf.mxu0
    %v336 = vadd.f32 %v277, %v335
    %v337 = vpop.f32.mrf.mxu0
    %v338 = vadd.f32 %v277, %v337
    %339 = vdwg.mxu0
    %v340 = vmax.f32 %v336, 0.0
    %v341 = vmax.f32 %v338, 0.0
    %v342 = vpack.c.bf16 %v341, %v340
    %v343 = vld [vmem:[#allocation7] sm:$0xf]
    %v344 = vld [vmem:[#allocation7 + $0x4] sm:$0xf]
    %v345 = vld [vmem:[#allocation7 + $0x8] sm:$0xf]
    %v346 = vld [vmem:[#allocation7 + $0xc] sm:$0xf]
    %v347 = vld [vmem:[#allocation7 + $0x10] sm:$0xf]
    %v348 = vld [vmem:[#allocation7 + $0x14] sm:$0xf]
    %v349 = vld [vmem:[#allocation7 + $0x18] sm:$0xf]
    %v350 = vld [vmem:[#allocation7 + $0x1c] sm:$0xf]
    %v351 = vld [vmem:[#allocation7 + $0x20] sm:$0xf]
    %v352 = vld [vmem:[#allocation7 + $0x24] sm:$0xf]
    %v353 = vld [vmem:[#allocation7 + $0x28] sm:$0xf]
    %v354 = vld [vmem:[#allocation7 + $0x2c] sm:$0xf]
    %v355 = vld [vmem:[#allocation7 + $0x30] sm:$0xf]
    %v356 = vld [vmem:[#allocation7 + $0x34] sm:$0xf]
    %v357 = vld [vmem:[#allocation7 + $0x38] sm:$0xf]
    %v358 = vld [vmem:[#allocation7 + $0x3c] sm:$0xf]
    %v359 = vperm.slane %v90, 3
    %v376 = vunpack.c.l.b16 %v343
    %v377 = vunpack.c.l.b16 %v344
    %v378 = vunpack.c.l.b16 %v345
    %v379 = vunpack.c.l.b16 %v346
    %v380 = vunpack.c.l.b16 %v347
    %v381 = vunpack.c.l.b16 %v348
    %v382 = vunpack.c.l.b16 %v349
    %v383 = vunpack.c.l.b16 %v350
    %v384 = vunpack.c.l.b16 %v351
    %v385 = vunpack.c.l.b16 %v352
    %v386 = vunpack.c.l.b16 %v353
    %v387 = vunpack.c.l.b16 %v354
    %v388 = vunpack.c.l.b16 %v355
    %v389 = vunpack.c.l.b16 %v356
    %v390 = vunpack.c.l.b16 %v357
    %v391 = vunpack.c.l.b16 %v358
    %v392 = vpack.c.b16 %v377, %v376
    %v393 = vpack.c.b16 %v379, %v378
    %v394 = vpack.c.b16 %v381, %v380
    %v395 = vpack.c.b16 %v383, %v382
    %v396 = vpack.c.b16 %v385, %v384
    %v397 = vpack.c.b16 %v387, %v386
    %v398 = vpack.c.b16 %v389, %v388
    %v399 = vpack.c.b16 %v391, %v390
    %408 = vmatpush.bf16.msra.mxu0 %v399
    %409 = vmatpush.bf16.msra.mxu0 %v398
    %410 = vmatpush.bf16.msra.mxu0 %v397
    %411 = vmatpush.bf16.msra.mxu0 %v396
    %412 = vmatpush.bf16.msra.mxu0 %v395
    %413 = vmatpush.bf16.msra.mxu0 %v394
    %414 = vmatpush.bf16.msra.mxu0 %v393
    %415 = vmatpush.bf16.msra.mxu0 %v392
    %416 = vmatmul.bf16.gmra.mxu0 %v342
    %v417 = vpop.f32.mrf.mxu0
    %v418 = vadd.f32 %v359, %v417
    %v419 = vpop.f32.mrf.mxu0
    %v420 = vadd.f32 %v359, %v419
    %421 = vdwg.mxu0
    %422 = vst [vmem:[%s7] sm:$0xff] %v418
    %423 = vst [vmem:[%s7 + $0x8] sm:$0xff] %v420
    // Predicated region
    $region42: #{netbio_forward.1} parent=1 // pred_check
      _
    $region43: #{netbio_forward.1} parent=1 // pred_check_branch
      %425 = sbr.rel (0) target = $region45
    $region44: #{netbio_forward.1} parent=1 // pred_region
      _
    $region45: #{netbio_forward.1} parent=1 // pred_fallthru
      _
    // Predicated region
    $region46: #{netbio_forward.1} parent=1 // pred_check
      _
    $region47: #{netbio_forward.1} parent=1 // pred_check_branch
      %427 = sbr.rel (0) target = $region49
    $region48: #{netbio_forward.1} parent=1 // pred_region
      _
    $region49: #{netbio_forward.1} parent=1 // pred_fallthru
      _
    // Predicated region
    $region50: #{netbio_forward.1} parent=1 // pred_check
      _
    $region51: #{netbio_forward.1} parent=1 // pred_check_branch
      %429 = sbr.rel (0) target = $region53
    $region52: #{netbio_forward.1} parent=1 // pred_region
      _
    $region53: #{netbio_forward.1} parent=1 // pred_fallthru
      _
    // Predicated region
    $region54: #{netbio_forward.1} parent=1 // pred_check
      _
    $region55: #{netbio_forward.1} parent=1 // pred_check_branch
      %431 = sbr.rel (0) target = $region57
    $region56: #{netbio_forward.1} parent=1 // pred_region
      _
    $region57: #{netbio_forward.1} parent=1 // pred_fallthru
      _
    %432 = vsyncpa [#allocation3], 1
    %433 = vsyncpa [#allocation5], 1
    %434 = vsyncpa [#allocation8], 1

</llo_original>
